<compile_context>
chip_gen: v7x
topology: tpu7x:2x2x1
jax: 0.10.0
libtpu: 0.0.40
codegen_flags: <defaults>
</compile_context>

<pallas_src>
import jax
import jax.numpy as jnp
from jax.experimental import pallas as pl
from jax.experimental.pallas import tpu as pltpu

# ---- ConvBlock configuration (mirrors ConvBlock.__init__ args) -------------
IN_CH, OUT_CH = 4, 8
KH = KW = 3            # kernel_size
STRIDE = 1
PAD = 1
MAX_POOL = (2, 2)      # max_pooling
BATCH_NORM = True
LEAKY = True
NEG_SLOPE = 0.2
BN_EPS = 1e-5

LANE = 128


def _round_up(x, m):
    return (x + m - 1) // m * m


@jax.jit
def conv_block_forward(x_nchw, weight, bias, gamma, beta, run_mean, run_var):
    """Fused Conv3x3(s=1,p=1) + BN(eval) + LeakyReLU(0.2) + MaxPool(2,2) forward."""
    # The fused parity-plane formulation is specialized to this configuration.
    assert (KH, KW, STRIDE, PAD) == (3, 3, 1, 1) and tuple(MAX_POOL) == (2, 2)

    N, C, H, W = x_nchw.shape
    OC = weight.shape[0]
    PH, PW = H // 2, W // 2                 # pooled output (conv output is H x W)
    HPP, WPP = PH + 1, PW + 1               # parity-plane extent (+1 row/col halo)
    L = HPP * WPP
    LP = _round_up(L, LANE)                 # per-image lane extent (zero padded)
    KPS = _round_up(4 * C, 16)              # plane-stack rows (bf16 sublane tile = 16)
    OCP = _round_up(OC, 8)                  # accumulator rows (f32 sublane tile = 8)

    # ---- per-step batching: >=2 parallel steps (v7x's 2 TCs), ~1 MiB planes/step ------
    per_img_bytes = KPS * LP * 2
    nb_cap = max(1, N // 2)                 # guarantees >= 2 grid steps whenever N >= 2
    NB = int(max(1, min(nb_cap, 16, (1 << 20) // max(per_img_bytes, 1))))
    n_steps = -(-N // NB)
    N_pad = n_steps * NB

    # ---- eval-mode BatchNorm: f32 scale (applied in-kernel) + f32 shift ---------------
    if BATCH_NORM:
        scale = (gamma / jnp.sqrt(run_var + BN_EPS)).astype(jnp.float32)
        shift = (beta + (bias - run_mean) * scale).astype(jnp.float32)
    else:
        scale = jnp.ones((OC,), jnp.float32)
        shift = bias.astype(jnp.float32)
    scale_vec = jnp.tile(jnp.pad(scale, (0, OCP - OC)), 4).reshape(4 * OCP, 1)
    shift_vec = jnp.pad(shift, (0, OCP - OC)).reshape(OCP, 1)

    # ---- weight matrix: rows = pool parity (a,b) x OC,
    #                     cols = lane-shift (dh,dw) x plane parity (r,s) x C -------------
    w32 = weight.astype(jnp.float32)
    w_big = jnp.zeros((4 * OCP, 4 * KPS), jnp.float32)
    for a in range(2):
        for b in range(2):
            row0 = (a * 2 + b) * OCP
            for dh in range(2):
                for dw in range(2):
                    for r in range(2):
                        for s in range(2):
                            kh = 2 * dh + r - a
                            kw = 2 * dw + s - b
                            if 0 <= kh < KH and 0 <= kw < KW:
                                col0 = (dh * 2 + dw) * KPS + (r * 2 + s) * C
                                w_big = w_big.at[row0:row0 + OC, col0:col0 + C].set(
                                    w32[:, :, kh, kw])
    w_big = w_big.astype(jnp.bfloat16)

    # ---- parity planes of the zero-padded input (stride-2 slices, ~1x input, bf16) ----
    xb = x_nchw.astype(jnp.bfloat16)
    xp = jnp.pad(xb, ((0, 0), (0, 0), (PAD, PAD), (PAD, PAD)))
    planes = [xp[:, :, r::2, s::2][:, :, :HPP, :WPP]
              for r in range(2) for s in range(2)]
    pstack = jnp.stack(planes, axis=1).reshape(N, 4 * C, L)       # row = (r*2+s)*C + c
    pstack = jnp.pad(pstack, ((0, N_pad - N), (0, KPS - 4 * C), (0, LP - L)))

    vmem_limit = int(min(
        64 << 20,
        max(32 << 20,
            2 * NB * (2 * KPS * LP * 2 + 2 * OCP * LP * 4
                      + 4 * KPS * LP * 2 + 4 * OCP * LP * 4))))

    def kernel(p_ref, w_ref, sc_ref, sh_ref, o_ref):
        w = w_ref[...]                      # (4*OCP, 4*KPS) bf16
        sc = sc_ref[...]                    # (4*OCP, 1)     f32
        sh = sh_ref[...]                    # (OCP, 1)       f32

        def shl(v, d):
            # v[:, i] -> v[:, i + d]; the circular tail only lands in unused halo/pad
            # lanes (lowers to a lane rotate -- cheap next to the MXU dot).
            return jnp.concatenate([v[:, d:], v[:, :d]], axis=1)

        for jb in range(NB):                # static unroll, NB <= 16
            p = p_ref[jb]                   # (KPS, LP) bf16: one image's plane stack
            patches = jnp.concatenate(
                [p, shl(p, 1), shl(p, WPP), shl(p, WPP + 1)], axis=0)   # (4*KPS, LP)
            # One MXU dot gives all four pool-window parities at once.
            acc = jnp.dot(w, patches, preferred_element_type=jnp.float32)  # (4*OCP, LP)
            acc = acc * sc                  # f32 BN scale BEFORE the pool max (sign-safe)
            pooled = jnp.maximum(
                jnp.maximum(acc[0 * OCP:1 * OCP], acc[1 * OCP:2 * OCP]),
                jnp.maximum(acc[2 * OCP:3 * OCP], acc[3 * OCP:4 * OCP]))
            y = pooled + sh                 # shift + activation hoisted after the max:
            if LEAKY:                       # valid because both are monotone (slope>=0)
                y = jnp.maximum(y, NEG_SLOPE * y)
            else:
                y = jnp.maximum(y, 0.0)
            o_ref[jb] = y

    out = pl.pallas_call(
        kernel,
        out_shape=jax.ShapeDtypeStruct((N_pad, OCP, LP), jnp.float32),
        grid=(n_steps,),
        in_specs=[
            pl.BlockSpec((NB, KPS, LP), lambda i: (i, 0, 0)),
            pl.BlockSpec((4 * OCP, 4 * KPS), lambda i: (0, 0)),
            pl.BlockSpec((4 * OCP, 1), lambda i: (0, 0)),
            pl.BlockSpec((OCP, 1), lambda i: (0, 0)),
        ],
        out_specs=pl.BlockSpec((NB, OCP, LP), lambda i: (i, 0, 0)),
        compiler_params=pltpu.CompilerParams(
            dimension_semantics=("parallel",),
            vmem_limit_bytes=vmem_limit),
    )(pstack, w_big, scale_vec, shift_vec)

    # Batch stays leading -> only a tiny slice/reshape of the pooled tensor, no transpose.
    return out[:N, :OC, :L].reshape(N, OC, HPP, WPP)[:, :, :PH, :PW]


# ---- Pure-JAX f32 reference (PyTorch semantics, for correctness check) ------
def _reference(x_nchw, weight, bias, gamma, beta, run_mean, run_var):
    y = jax.lax.conv_general_dilated(
        x_nchw, weight, (STRIDE, STRIDE), ((PAD, PAD), (PAD, PAD)),
        dimension_numbers=("NCHW", "OIHW", "NCHW"))
    y = y + bias.reshape(1, -1, 1, 1)
    if BATCH_NORM:
        y = ((y - run_mean.reshape(1, -1, 1, 1))
             / jnp.sqrt(run_var.reshape(1, -1, 1, 1) + BN_EPS)
             * gamma.reshape(1, -1, 1, 1) + beta.reshape(1, -1, 1, 1))
    y = jnp.where(y > 0, y, NEG_SLOPE * y) if LEAKY else jnp.maximum(y, 0.0)
    if MAX_POOL[0]:
        n, c, h, w = y.shape
        y = y.reshape(n, c, h // MAX_POOL[0], MAX_POOL[0],
                      w // MAX_POOL[1], MAX_POOL[1]).max(axis=(3, 5))
    return y


if __name__ == "__main__":
    key = jax.random.PRNGKey(0)
    kx, kw, kb, kg, kbe, km, kv = jax.random.split(key, 7)

    N, H, W = 2, 16, 16
    x = jax.random.normal(kx, (N, IN_CH, H, W), jnp.float32)

    fan_in = IN_CH * KH * KW
    weight = jax.random.normal(kw, (OUT_CH, IN_CH, KH, KW), jnp.float32) / jnp.sqrt(fan_in)
    bias = 0.1 * jax.random.normal(kb, (OUT_CH,), jnp.float32)
    gamma = 1.0 + 0.1 * jax.random.normal(kg, (OUT_CH,), jnp.float32)
    beta = 0.1 * jax.random.normal(kbe, (OUT_CH,), jnp.float32)
    run_mean = 0.1 * jax.random.normal(km, (OUT_CH,), jnp.float32)
    run_var = jnp.abs(jax.random.normal(kv, (OUT_CH,), jnp.float32)) + 0.5

    out = conv_block_forward(x, weight, bias, gamma, beta, run_mean, run_var)
    out = jax.block_until_ready(out)

    ref = _reference(x, weight, bias, gamma, beta, run_mean, run_var)
    assert out.shape == (N, OUT_CH, H // MAX_POOL[0], W // MAX_POOL[1]), out.shape
    # Tolerance covers bf16 rounding of conv operands only (f32 accumulate, f32 BN scale);
    # tighter than before because the BN scale is no longer folded into bf16 weights.
    assert jnp.allclose(out, ref, atol=5e-2, rtol=2e-2), float(jnp.max(jnp.abs(out - ref)))

    print("KERNEL_OK")
</pallas_src>

<mosaic_0001>
module attributes {stable_mosaic.version = 11 : i64} {
  func.func @kernel(%arg0: i32, %arg1: memref<1x16x128xbf16, #tpu.memory_space<vmem>>, %arg2: memref<32x64xbf16, #tpu.memory_space<vmem>>, %arg3: memref<32x1xf32, #tpu.memory_space<vmem>>, %arg4: memref<8x1xf32, #tpu.memory_space<vmem>>, %arg5: memref<1x8x128xf32, #tpu.memory_space<vmem>>) attributes {dimension_semantics = [#tpu.dimension_semantics<parallel>], iteration_bounds = array<i64: 2>, scalar_prefetch = 0 : i64, scratch_operands = 0 : i64, tpu.core_type = #tpu.core_type<tc>, window_params = [{transform_indices = @transform_0, window_bounds = array<i64: 1, 16, 128>}, {pipeline_mode = #tpu.pipeline_mode<synchronous>, transform_indices = @transform_1, window_bounds = array<i64: 32, 64>}, {pipeline_mode = #tpu.pipeline_mode<synchronous>, transform_indices = @transform_2, window_bounds = array<i64: 32, 1>}, {pipeline_mode = #tpu.pipeline_mode<synchronous>, transform_indices = @transform_3, window_bounds = array<i64: 8, 1>}, {transform_indices = @transform_4, window_bounds = array<i64: 1, 8, 128>}]} {
    %c0 = arith.constant 0 : index
    %c0_0 = arith.constant 0 : index
    %0 = vector.load %arg2[%c0, %c0_0] : memref<32x64xbf16, #tpu.memory_space<vmem>>, vector<32x64xbf16>
    %c0_1 = arith.constant 0 : index
    %c0_2 = arith.constant 0 : index
    %1 = vector.load %arg3[%c0_1, %c0_2] : memref<32x1xf32, #tpu.memory_space<vmem>>, vector<32x1xf32>
    %c0_3 = arith.constant 0 : index
    %c0_4 = arith.constant 0 : index
    %2 = vector.load %arg4[%c0_3, %c0_4] : memref<8x1xf32, #tpu.memory_space<vmem>>, vector<8x1xf32>
    %c0_5 = arith.constant 0 : index
    %c0_6 = arith.constant 0 : index
    %c0_7 = arith.constant 0 : index
    %3 = vector.load %arg1[%c0_5, %c0_6, %c0_7] : memref<1x16x128xbf16, #tpu.memory_space<vmem>>, vector<1x16x128xbf16>
    %4 = vector.shape_cast %3 : vector<1x16x128xbf16> to vector<16x128xbf16>
    %5 = vector.extract_strided_slice %4 {offsets = [0, 1], sizes = [16, 127], strides = [1, 1]} : vector<16x128xbf16> to vector<16x127xbf16>
    %6 = vector.extract_strided_slice %4 {offsets = [0, 0], sizes = [16, 1], strides = [1, 1]} : vector<16x128xbf16> to vector<16x1xbf16>
    %7 = tpu.concatenate %5, %6 in 1 : vector<16x127xbf16>, vector<16x1xbf16> -> vector<16x128xbf16>
    %8 = vector.extract_strided_slice %4 {offsets = [0, 9], sizes = [16, 119], strides = [1, 1]} : vector<16x128xbf16> to vector<16x119xbf16>
    %9 = vector.extract_strided_slice %4 {offsets = [0, 0], sizes = [16, 9], strides = [1, 1]} : vector<16x128xbf16> to vector<16x9xbf16>
    %10 = tpu.concatenate %8, %9 in 1 : vector<16x119xbf16>, vector<16x9xbf16> -> vector<16x128xbf16>
    %11 = vector.extract_strided_slice %4 {offsets = [0, 10], sizes = [16, 118], strides = [1, 1]} : vector<16x128xbf16> to vector<16x118xbf16>
    %12 = vector.extract_strided_slice %4 {offsets = [0, 0], sizes = [16, 10], strides = [1, 1]} : vector<16x128xbf16> to vector<16x10xbf16>
    %13 = tpu.concatenate %11, %12 in 1 : vector<16x118xbf16>, vector<16x10xbf16> -> vector<16x128xbf16>
    %14 = tpu.concatenate %4, %7, %10, %13 in 0 : vector<16x128xbf16>, vector<16x128xbf16>, vector<16x128xbf16>, vector<16x128xbf16> -> vector<64x128xbf16>
    %cst = arith.constant dense<0.000000e+00> : vector<32x128xf32>
    %15 = tpu.matmul %0, %14, %cst {dimension_numbers = #tpu.dot_dimension_numbers<[1], [0], [0], [1], [0, 0, 1, 1], [], []>} : vector<32x64xbf16>, vector<64x128xbf16>, vector<32x128xf32> -> vector<32x128xf32>
    %16 = vector.broadcast %1 : vector<32x1xf32> to vector<32x128xf32>
    %17 = arith.mulf %15, %16 : vector<32x128xf32>
    %18 = vector.extract_strided_slice %17 {offsets = [0, 0], sizes = [8, 128], strides = [1, 1]} : vector<32x128xf32> to vector<8x128xf32>
    %19 = vector.extract_strided_slice %17 {offsets = [8, 0], sizes = [8, 128], strides = [1, 1]} : vector<32x128xf32> to vector<8x128xf32>
    %20 = arith.maximumf %18, %19 : vector<8x128xf32>
    %21 = vector.extract_strided_slice %17 {offsets = [16, 0], sizes = [8, 128], strides = [1, 1]} : vector<32x128xf32> to vector<8x128xf32>
    %22 = vector.extract_strided_slice %17 {offsets = [24, 0], sizes = [8, 128], strides = [1, 1]} : vector<32x128xf32> to vector<8x128xf32>
    %23 = arith.maximumf %21, %22 : vector<8x128xf32>
    %24 = arith.maximumf %20, %23 : vector<8x128xf32>
    %25 = vector.broadcast %2 : vector<8x1xf32> to vector<8x128xf32>
    %26 = arith.addf %24, %25 : vector<8x128xf32>
    %cst_8 = arith.constant 2.000000e-01 : f32
    %27 = vector.broadcast %cst_8 : f32 to vector<8x128xf32>
    %28 = arith.mulf %27, %26 : vector<8x128xf32>
    %29 = arith.maximumf %26, %28 : vector<8x128xf32>
    %c0_9 = arith.constant 0 : index
    %c0_10 = arith.constant 0 : index
    %c0_11 = arith.constant 0 : index
    %30 = vector.load %arg5[%c0_9, %c0_10, %c0_11] : memref<1x8x128xf32, #tpu.memory_space<vmem>>, vector<1x8x128xf32>
    %31 = vector.shape_cast %30 : vector<1x8x128xf32> to vector<8x128xf32>
    %32 = vector.shape_cast %29 : vector<8x128xf32> to vector<1x8x128xf32>
    tpu.vector_store %arg5[%c0_9, %c0_10, %c0_11], %32 {strides = array<i32>} : memref<1x8x128xf32, #tpu.memory_space<vmem>>, vector<1x8x128xf32>,
    return
  }
  func.func @transform_0(%arg0: i32) -> (i32, i32, i32) {
    %c0_i32 = arith.constant 0 : i32
    %c0_i32_0 = arith.constant 0 : i32
    %c0_i32_1 = arith.constant 0 : i32
    return %arg0, %c0_i32, %c0_i32_0 : i32, i32, i32
  }
  func.func @transform_1(%arg0: i32) -> (i32, i32) {
    %c0_i32 = arith.constant 0 : i32
    %c0_i32_0 = arith.constant 0 : i32
    %c0_i32_1 = arith.constant 0 : i32
    return %c0_i32, %c0_i32_0 : i32, i32
  }
  func.func @transform_2(%arg0: i32) -> (i32, i32) {
    %c0_i32 = arith.constant 0 : i32
    %c0_i32_0 = arith.constant 0 : i32
    %c0_i32_1 = arith.constant 0 : i32
    return %c0_i32, %c0_i32_0 : i32, i32
  }
  func.func @transform_3(%arg0: i32) -> (i32, i32) {
    %c0_i32 = arith.constant 0 : i32
    %c0_i32_0 = arith.constant 0 : i32
    %c0_i32_1 = arith.constant 0 : i32
    return %c0_i32, %c0_i32_0 : i32, i32
  }
  func.func @transform_4(%arg0: i32) -> (i32, i32, i32) {
    %c0_i32 = arith.constant 0 : i32
    %c0_i32_0 = arith.constant 0 : i32
    %c0_i32_1 = arith.constant 0 : i32
    return %arg0, %c0_i32, %c0_i32_0 : i32, i32, i32
  }
}

</mosaic_0001>

<llo_original>
// kernel: tile.8
$region0: #{tile.8}
  #allocation0 [shape = 's32[1]{0}', space=sflag, size = 0x4, scoped, tag = 'scoped memory for tile.8']
  %s0 = inlined_call_operand.vmem [shape: f32[8], index: 0, kind: input, shape index: {}]
  %s1 = inlined_call_operand.vmem [shape: f32[4,8], index: 1, kind: output, shape index: {}]
  // Predicated region
  $region2: #{tile.8} parent=0 // pred_check
    _
  $region3: #{tile.8} parent=0 // pred_check_branch
    %3 = sbr.rel (0) target = $region5
  $region4: #{tile.8} parent=0 // pred_region
    _
  $region5: #{tile.8} parent=0 // pred_fallthru
    _
  %v4 = vld [vmem:[%s0] ss:$0 sm:$0xff]
  %5 = vst [vmem:[%s1] sm:$0xf] %v4

// kernel: tile.0
$region0: #{tile.0}
  %s0 = inlined_call_operand.vmem [shape: f32[4,8], index: 0, kind: input, shape index: {}]
  %s1 = inlined_call_operand.vmem [shape: f32[32,1], index: 1, kind: output, shape index: {}]
  $region1: #{tile.0} parent=0
    #allocation0 [shape = 'u8[4096]{0}', space=vmem, size = 0x1000, scoped, tag = 'scoped mem for input reshape']
    %s3 = sshllo.u32 0, 4
    %v4 = vld [vmem:[%s0] sm:%s3]
    %5 = vst [vmem:[#allocation0] sm:%s3] %v4
    %v6 = vld [vmem:[#allocation0] sm:$0xf]
    %vm7 = vcmask 7168
    %8 = vst.msk [vmem:[%s1] ss:$8 sm:$0xf] %vm7, %v6
    %v9 = vld [vmem:[#allocation0] sm:$0xf]
    %10 = vrot.lane.b32.xlu0 %v9, 127
    %v11 = vpop.permute.xlu0 %10
    %vm12 = vcmask 7168
    %s13 = scalar_lea.vmem %s1, 1
    %14 = vst.msk [vmem:[%s13] ss:$8 sm:$0xf] %vm12, %v11
    %v15 = vld [vmem:[#allocation0] sm:$0xf]
    %16 = vrot.lane.b32.xlu0 %v15, 126
    %v17 = vpop.permute.xlu0 %16
    %vm18 = vcmask 7168
    %s19 = scalar_lea.vmem %s1, 2
    %20 = vst.msk [vmem:[%s19] ss:$8 sm:$0xf] %vm18, %v17
    %v21 = vld [vmem:[#allocation0] sm:$0xf]
    %22 = vrot.lane.b32.xlu0 %v21, 125
    %v23 = vpop.permute.xlu0 %22
    %vm24 = vcmask 7168
    %s25 = scalar_lea.vmem %s1, 3
    %26 = vst.msk [vmem:[%s25] ss:$8 sm:$0xf] %vm24, %v23
    %v27 = vld [vmem:[#allocation0] sm:$0xf]
    %28 = vrot.lane.b32.xlu0 %v27, 124
    %v29 = vpop.permute.xlu0 %28
    %vm30 = vcmask 7168
    %s31 = scalar_lea.vmem %s1, 4
    %32 = vst.msk [vmem:[%s31] ss:$8 sm:$0xf] %vm30, %v29
    %v33 = vld [vmem:[#allocation0] sm:$0xf]
    %34 = vrot.lane.b32.xlu0 %v33, 123
    %v35 = vpop.permute.xlu0 %34
    %vm36 = vcmask 7168
    %s37 = scalar_lea.vmem %s1, 5
    %38 = vst.msk [vmem:[%s37] ss:$8 sm:$0xf] %vm36, %v35
    %v39 = vld [vmem:[#allocation0] sm:$0xf]
    %40 = vrot.lane.b32.xlu0 %v39, 122
    %v41 = vpop.permute.xlu0 %40
    %vm42 = vcmask 7168
    %s43 = scalar_lea.vmem %s1, 6
    %44 = vst.msk [vmem:[%s43] ss:$8 sm:$0xf] %vm42, %v41
    %v45 = vld [vmem:[#allocation0] sm:$0xf]
    %46 = vrot.lane.b32.xlu0 %v45, 121
    %v47 = vpop.permute.xlu0 %46
    %vm48 = vcmask 7168
    %s49 = scalar_lea.vmem %s1, 7
    %50 = vst.msk [vmem:[%s49] ss:$8 sm:$0xf] %vm48, %v47

// kernel: conv_block_forward.1
$region0: #{conv_block_forward.1}
  #allocation0 [shape = 'u32[]', space=smem, size = 0x4, offset = 0x4, fixed_abs, tag = 'smem constant byte address 0x4 - core index']
  #allocation1 [shape = 'u32[144,128]{1,0:T(1,128)}', space=vmem, size = 0x12000, scoped, tag = 'internal scratch']
  %s0 = inlined_call_operand.vmem [shape: bf16[2,16,128], index: 0, kind: input, shape index: {}]
  %s1 = inlined_call_operand.vmem [shape: bf16[32,64], index: 1, kind: input, shape index: {}]
  %s2 = inlined_call_operand.vmem [shape: f32[32,1], index: 2, kind: input, shape index: {}]
  %s3 = inlined_call_operand.vmem [shape: f32[8,1], index: 3, kind: input, shape index: {}]
  %s4 = inlined_call_operand.vmem [shape: f32[2,8,128], index: 4, kind: output, shape index: {}]
  %s5 = sld [smem:[#allocation0]]
  $region49: #{conv_block_forward.1} parent=0
    _
  %s7 = ssub.s32 1, %s5
  %s8 = scalar_select 0, %s7, %s5
  loop: start=0, step=1, limit=4
  $region2: #{conv_block_forward.1} parent=0 // loop_pre_header
    _
  $region3: #{conv_block_forward.1} parent=0 // loop_header
    %s10 = sphi 0, %s14
    %p11 = scmp.ge.s32.totalorder %s10, 4
    %s20 = sphi 0, %s22
    %s23 = sphi 0, %s20
    %s24 = sphi 0, %s23
    %s40 = sphi 0, %s24
    %s44 = sphi 0, %s44
    %s46 = sphi 0, %s44
    %s47 = sphi 0, %s46
    %s61 = sphi 0, %s47
    %s65 = sphi 0, %s65
    %s67 = sphi 0, %s65
    %s68 = sphi 0, %s67
    %s82 = sphi 0, %s68
    %s86 = sphi 0, %s86
    %s88 = sphi 0, %s86
    %s89 = sphi 0, %s88
    %s103 = sphi 0, %s89
    %s109 = sphi 0, %s111
    %s112 = sphi 0, %s109
    %s113 = sphi 0, %s112
    %s129 = sphi 0, %s113
  $region4: #{conv_block_forward.1} parent=0 // loop_header_branch
    %13 = sbr.rel (%p11) target = $region8
  $region5: #{conv_block_forward.1} parent=0 // loop_body
    %s15 = ssub.s32 %s10, 1
    %s16 = ssub.s32 %s10, 2
    %s17 = sadd.s32 %s10, 1
    %s18 = ssub.s32 %s10, %s17
    %p19 = scmp.eq.s32.totalorder %s18, 0
    %s21 = sadd.s32 %s20, 1
    %s22 = scalar_select %p19, %s20, %s21
    %p25 = pneg %p19
    %p26 = scmp.eq.s32.totalorder %s10, 1
    %p27 = por %p25, %p26
    %p28 = scmp.ne.s32.totalorder %s20, %s23
    %p29 = scmp.eq.s32.totalorder %s10, 0
    %p30 = por %p28, %p29
    %p31 = scmp.ne.s32.totalorder %s20, %s23
    %p32 = scmp.eq.s32.totalorder %s15, 1
    %p33 = por %p31, %p32
    %p34 = scmp.ne.s32.totalorder %s23, %s24
    %p35 = scmp.eq.s32.totalorder %s15, 0
    %p36 = por %p34, %p35
    %p37 = scmp.ne.s32.totalorder %s23, %s24
    %p38 = scmp.eq.s32.totalorder %s16, 1
    %p39 = por %p37, %p38
    %p41 = scmp.ne.s32.totalorder %s24, %s40
    %p42 = scmp.eq.s32.totalorder %s16, 0
    %p43 = por %p41, %p42
    %s45 = sadd.s32 %s44, 1
    %p48 = scmp.eq.s32.totalorder %s10, 1
    %p49 = scmp.ne.s32.totalorder %s44, %s46
    %p50 = scmp.eq.s32.totalorder %s10, 0
    %p51 = por %p49, %p50
    %p52 = scmp.ne.s32.totalorder %s44, %s46
    %p53 = scmp.eq.s32.totalorder %s15, 1
    %p54 = por %p52, %p53
    %p55 = scmp.ne.s32.totalorder %s46, %s47
    %p56 = scmp.eq.s32.totalorder %s15, 0
    %p57 = por %p55, %p56
    %p58 = scmp.ne.s32.totalorder %s46, %s47
    %p59 = scmp.eq.s32.totalorder %s16, 1
    %p60 = por %p58, %p59
    %p62 = scmp.ne.s32.totalorder %s47, %s61
    %p63 = scmp.eq.s32.totalorder %s16, 0
    %p64 = por %p62, %p63
    %s66 = sadd.s32 %s65, 1
    %p69 = scmp.eq.s32.totalorder %s10, 1
    %p70 = scmp.ne.s32.totalorder %s65, %s67
    %p71 = scmp.eq.s32.totalorder %s10, 0
    %p72 = por %p70, %p71
    %p73 = scmp.ne.s32.totalorder %s65, %s67
    %p74 = scmp.eq.s32.totalorder %s15, 1
    %p75 = por %p73, %p74
    %p76 = scmp.ne.s32.totalorder %s67, %s68
    %p77 = scmp.eq.s32.totalorder %s15, 0
    %p78 = por %p76, %p77
    %p79 = scmp.ne.s32.totalorder %s67, %s68
    %p80 = scmp.eq.s32.totalorder %s16, 1
    %p81 = por %p79, %p80
    %p83 = scmp.ne.s32.totalorder %s68, %s82
    %p84 = scmp.eq.s32.totalorder %s16, 0
    %p85 = por %p83, %p84
    %s87 = sadd.s32 %s86, 1
    %p90 = scmp.eq.s32.totalorder %s10, 1
    %p91 = scmp.ne.s32.totalorder %s86, %s88
    %p92 = scmp.eq.s32.totalorder %s10, 0
    %p93 = por %p91, %p92
    %p94 = scmp.ne.s32.totalorder %s86, %s88
    %p95 = scmp.eq.s32.totalorder %s15, 1
    %p96 = por %p94, %p95
    %p97 = scmp.ne.s32.totalorder %s88, %s89
    %p98 = scmp.eq.s32.totalorder %s15, 0
    %p99 = por %p97, %p98
    %p100 = scmp.ne.s32.totalorder %s88, %s89
    %p101 = scmp.eq.s32.totalorder %s16, 1
    %p102 = por %p100, %p101
    %p104 = scmp.ne.s32.totalorder %s89, %s103
    %p105 = scmp.eq.s32.totalorder %s16, 0
    %p106 = por %p104, %p105
    %s107 = ssub.s32 %s10, %s17
    %p108 = scmp.eq.s32.totalorder %s107, 0
    %s110 = sadd.s32 %s109, 1
    %s111 = scalar_select %p108, %s109, %s110
    %p114 = pneg %p108
    %p115 = scmp.eq.s32.totalorder %s10, 1
    %p116 = por %p114, %p115
    %p117 = scmp.ne.s32.totalorder %s109, %s112
    %p118 = scmp.eq.s32.totalorder %s10, 0
    %p119 = por %p117, %p118
    %p120 = scmp.ne.s32.totalorder %s109, %s112
    %p121 = scmp.eq.s32.totalorder %s15, 1
    %p122 = por %p120, %p121
    %p123 = scmp.ne.s32.totalorder %s112, %s113
    %p124 = scmp.eq.s32.totalorder %s15, 0
    %p125 = por %p123, %p124
    %p126 = scmp.ne.s32.totalorder %s112, %s113
    %p127 = scmp.eq.s32.totalorder %s16, 1
    %p128 = por %p126, %p127
    %p130 = scmp.ne.s32.totalorder %s113, %s129
    %p131 = scmp.eq.s32.totalorder %s16, 0
    %p132 = por %p130, %p131
    %p133 = scmp.le.s32.totalorder 1, %s10
    %p134 = scmp.lt.s32.totalorder %s10, 3
    %p135 = pnand %p133, %p134
    %p136 = pneg %p135
    // Predicated region
    $region9: #{conv_block_forward.1} parent=5 // pred_check
      _
    $region10: #{conv_block_forward.1} parent=5 // pred_check_branch
      %138 = sbr.rel (%p135) target = $region12
    $region11: #{conv_block_forward.1} parent=5 // pred_region
      %s139 = ssub.s32 %s10, 1
      // Predicated region
      $region13: #{conv_block_forward.1} parent=11 // pred_check
        %p140 = pneg %p57
      $region14: #{conv_block_forward.1} parent=11 // pred_check_branch
        %142 = sbr.rel (%p140) target = $region16
      $region15: #{conv_block_forward.1} parent=11 // pred_region
        _
      $region16: #{conv_block_forward.1} parent=11 // pred_fallthru
        _
      // Predicated region
      $region17: #{conv_block_forward.1} parent=11 // pred_check
        %p143 = pneg %p78
      $region18: #{conv_block_forward.1} parent=11 // pred_check_branch
        %145 = sbr.rel (%p143) target = $region20
      $region19: #{conv_block_forward.1} parent=11 // pred_region
        _
      $region20: #{conv_block_forward.1} parent=11 // pred_fallthru
        _
      // Predicated region
      $region21: #{conv_block_forward.1} parent=11 // pred_check
        %p146 = pneg %p99
      $region22: #{conv_block_forward.1} parent=11 // pred_check_branch
        %148 = sbr.rel (%p146) target = $region24
      $region23: #{conv_block_forward.1} parent=11 // pred_region
        _
      $region24: #{conv_block_forward.1} parent=11 // pred_fallthru
        _
    $region12: #{conv_block_forward.1} parent=5 // pred_fallthru
      _
    %p149 = scmp.lt.s32.totalorder %s10, 2
    // Predicated region
    $region25: #{conv_block_forward.1} parent=5 // pred_check
      %p150 = pneg %p149
    $region26: #{conv_block_forward.1} parent=5 // pred_check_branch
      %152 = sbr.rel (%p150) target = $region28
    $region27: #{conv_block_forward.1} parent=5 // pred_region
      // Predicated region
      $region29: #{conv_block_forward.1} parent=27 // pred_check
        %p153 = pneg %p30
      $region30: #{conv_block_forward.1} parent=27 // pred_check_branch
        %155 = sbr.rel (%p153) target = $region32
      $region31: #{conv_block_forward.1} parent=27 // pred_region
        %p156 = scmp.lt.s32.totalorder %s10, 1
        %s157 = scalar_select %p156, %s10, 1
        %s158 = smul.addr %s157, 2
        %s159 = smul.addr %s158, 4
        %s160 = scalar_lea.vmem %s0, %s159
      $region32: #{conv_block_forward.1} parent=27 // pred_fallthru
        _
    $region28: #{conv_block_forward.1} parent=5 // pred_fallthru
      _
    %p161 = scmp.le.s32.totalorder 1, %s10
    %p162 = scmp.lt.s32.totalorder %s10, 3
    %p163 = pnand %p161, %p162
    %p164 = pneg %p163
    // Predicated region
    $region33: #{conv_block_forward.1} parent=5 // pred_check
      _
    $region34: #{conv_block_forward.1} parent=5 // pred_check_branch
      %166 = sbr.rel (%p163) target = $region36
    $region35: #{conv_block_forward.1} parent=5 // pred_region
      %s167 = ssub.s32 %s10, 1
      %p168 = scmp.lt.s32.totalorder %s15, 1
      %s169 = scalar_select %p168, %s15, 1
      %s170 = smul.addr %s169, 2
      %s171 = smul.addr %s170, 4
      %s172 = scalar_lea.vmem %s0, %s171
      %p173 = pneg %p36
      %p174 = pneg %p33
      %p175 = pneg %p57
      %p176 = pneg %p54
      %p177 = pneg %p78
      %p178 = pneg %p75
      %p179 = pneg %p99
      %p180 = pneg %p96
      %p181 = pneg %p125
      %p182 = pneg %p122
      %p183 = scmp.lt.s32.totalorder %s15, 1
      %s184 = scalar_select %p183, %s15, 1
      %s185 = smul.addr %s184, 8
      %s186 = scalar_lea.vmem %s4, %s185
      %p187 = scmp.lt.s32.totalorder %s15, 1
      %s188 = scalar_select %p187, %s15, 1
      %s189 = smul.addr %s188, 2
      %s190 = smul.addr %s189, 4
      %s191 = scalar_lea.vmem %s0, %s190
      %p192 = scmp.lt.s32.totalorder %s15, 1
      %s193 = scalar_select %p192, %s15, 1
      %s194 = smul.addr %s193, 8
      %s195 = scalar_lea.vmem %s4, %s194
      %v197 = vld [vmem:[%s1] sm:$0xf]
      %v198 = vld [vmem:[%s1 + $0x4] sm:$0xf]
      %v199 = vld [vmem:[%s1 + $0x8] sm:$0xf]
      %v200 = vld [vmem:[%s1 + $0xc] sm:$0xf]
      %v201 = vld [vmem:[%s2] sm:$0xff]
      %v202 = vld [vmem:[%s2 + $0x8] sm:$0xff]
      %v203 = vld [vmem:[%s2 + $0x10] sm:$0xff]
      %v204 = vld [vmem:[%s2 + $0x18] sm:$0xff]
      %v205 = vld [vmem:[%s3] sm:$0xff]
      %v206 = vld [vmem:[%s191] sm:$0xf]
      %v207 = vld [vmem:[%s191 + $0x4] sm:$0xf]
      %v210 = vunpack.c.l.b16 %v206
      %v211 = vunpack.c.l.b16 %v207
      %v212 = vpack.c.b16 %v211, %v210
      %213 = vrot.lane.b32.xlu0 %v212, 127
      %v214 = vpop.permute.xlu0 %213
      %217 = vrot.lane.b32.xlu0 %v212, 119
      %v218 = vpop.permute.xlu0 %217
      %221 = vrot.lane.b32.xlu0 %v212, 118
      %v222 = vpop.permute.xlu0 %221
      %v230 = vunpack.c.l.b16 %v197
      %v231 = vunpack.c.l.b16 %v198
      %v232 = vunpack.c.l.b16 %v199
      %v233 = vunpack.c.l.b16 %v200
      %v234 = vpack.c.b16 %v231, %v230
      %v235 = vpack.c.b16 %v233, %v232
      %vm236 = vcmask 523264
      %v238 = vsel %vm236, %v234, 0
      %v241 = vsel %vm236, %v235, 0
      %243 = vmatprep.subr.bf16.mxu0 0
      %244 = vmatpush1.bf16.msra.mxu0 %v212
      %245 = vmatprep.subr.bf16.mxu0 0
      %246 = vmatpush1.bf16.msra.mxu0 %v214
      %247 = vmatprep.subr.bf16.mxu0 0
      %248 = vmatpush1.bf16.msra.mxu0 %v218
      %249 = vmatprep.subr.bf16.mxu0 0
      %250 = vmatpush1.bf16.msra.mxu0 %v222
      %251 = vmatprep.subr.bf16.mxu0 0
      %252 = vmatpush1.bf16.msra.mxu0 0
      %253 = vmatprep.subr.bf16.mxu0 0
      %254 = vmatpush1.bf16.msra.mxu0 0
      %255 = vmatprep.subr.bf16.mxu0 0
      %256 = vmatpush1.bf16.msra.mxu0 0
      %257 = vmatprep.subr.bf16.mxu0 0
      %258 = vmatpush1.bf16.msra.mxu0 0
      %259 = vmatprep.subr.bf16.mxu0 0
      %260 = vmatpush1.bf16.msra.mxu0 0
      %261 = vmatprep.subr.bf16.mxu0 0
      %262 = vmatpush1.bf16.msra.mxu0 0
      %263 = vmatprep.subr.bf16.mxu0 0
      %264 = vmatpush1.bf16.msra.mxu0 0
      %265 = vmatprep.subr.bf16.mxu0 0
      %266 = vmatpush1.bf16.msra.mxu0 0
      %267 = vmatprep.subr.bf16.mxu0 0
      %268 = vmatpush1.bf16.msra.mxu0 0
      %269 = vmatprep.subr.bf16.mxu0 0
      %270 = vmatpush1.bf16.msra.mxu0 0
      %271 = vmatprep.subr.bf16.mxu0 0
      %272 = vmatpush1.bf16.msra.mxu0 0
      %273 = vmatprep.subr.bf16.mxu0 0
      %274 = vmatpush1.bf16.msra.mxu0 0
      %275 = vmatprep.mubr.bf16.mxu0 0
      %276 = vmatmul.mubr.bf16.gmra.mrb[0].mxu0 %v238
      %v277 = vpop.f32.mrb[0].mxu0
      %v278 = vadd.f32 0.0, %v277
      %v279 = vpop.f32.mrb[0].mxu0
      %v280 = vpop.f32.mrb[0].mxu0
      %v281 = vadd.f32 0.0, %v280
      %v282 = vpop.f32.mrb[0].mxu0
      %283 = vmatprep.mubr.bf16.mxu0 0
      %284 = vmatmul.mubr.bf16.gmra.mrb[0].mxu0 %v241
      %v285 = vpop.f32.mrb[0].mxu0
      %v286 = vadd.f32 0.0, %v285
      %v287 = vpop.f32.mrb[0].mxu0
      %v288 = vpop.f32.mrb[0].mxu0
      %v289 = vadd.f32 0.0, %v288
      %v290 = vpop.f32.mrb[0].mxu0
      %291 = vdwg.mxu0
      %293 = vset.pattern.permute.xlu0 0
      %294 = vperm.xlu0 %293, %v201
      %v295 = vpop.permute.xlu0 %294
      %298 = vset.pattern.permute.xlu0 0
      %299 = vperm.xlu0 %298, %v202
      %v300 = vpop.permute.xlu0 %299
      %303 = vset.pattern.permute.xlu0 0
      %304 = vperm.xlu0 %303, %v203
      %v305 = vpop.permute.xlu0 %304
      %308 = vset.pattern.permute.xlu0 0
      %309 = vperm.xlu0 %308, %v204
      %v310 = vpop.permute.xlu0 %309
      %v312 = vmul.f32 %v278, %v295
      %v313 = vmul.f32 %v281, %v300
      %v314 = vmul.f32 %v286, %v305
      %v315 = vmul.f32 %v289, %v310
      %v316 = vmax.f32 %v312, %v313
      %v317 = vmax.f32 %v314, %v315
      %v318 = vmax.f32 %v316, %v317
      %320 = vset.pattern.permute.xlu0 0
      %321 = vperm.xlu0 %320, %v205
      %v322 = vpop.permute.xlu0 %321
      %v324 = vadd.f32 %v318, %v322
      %v325 = vmul.f32 %v324, 0.2
      %v326 = vmax.f32 %v324, %v325
      %327 = vst [vmem:[%s195] sm:$0xff] %v326
      %p328 = scmp.lt.s32.totalorder %s15, 1
      %s329 = scalar_select %p328, %s15, 1
      %s330 = smul.addr %s329, 8
      %s331 = scalar_lea.vmem %s4, %s330
      // Predicated region
      $region37: #{conv_block_forward.1} parent=35 // pred_check
        %p332 = pneg %p122
      $region38: #{conv_block_forward.1} parent=35 // pred_check_branch
        %334 = sbr.rel (%p332) target = $region40
      $region39: #{conv_block_forward.1} parent=35 // pred_region
        _
      $region40: #{conv_block_forward.1} parent=35 // pred_fallthru
        _
    $region36: #{conv_block_forward.1} parent=5 // pred_fallthru
      _
    %p335 = scmp.le.s32.totalorder 2, %s10
    // Predicated region
    $region41: #{conv_block_forward.1} parent=5 // pred_check
      %p336 = pneg %p335
    $region42: #{conv_block_forward.1} parent=5 // pred_check_branch
      %338 = sbr.rel (%p336) target = $region44
    $region43: #{conv_block_forward.1} parent=5 // pred_region
      %s339 = ssub.s32 %s10, 2
      // Predicated region
      $region45: #{conv_block_forward.1} parent=43 // pred_check
        %p340 = pneg %p128
      $region46: #{conv_block_forward.1} parent=43 // pred_check_branch
        %342 = sbr.rel (%p340) target = $region48
      $region47: #{conv_block_forward.1} parent=43 // pred_region
        %p343 = scmp.lt.s32.totalorder %s16, 1
        %s344 = scalar_select %p343, %s16, 1
        %s345 = smul.addr %s344, 8
        %s346 = scalar_lea.vmem %s4, %s345
      $region48: #{conv_block_forward.1} parent=43 // pred_fallthru
        _
    $region44: #{conv_block_forward.1} parent=5 // pred_fallthru
      _
  $region6: #{conv_block_forward.1} parent=0 // loop_footer
    %s14 = sadd.s32 1, %s10
  $region7: #{conv_block_forward.1} parent=0 // loop_footer_branch
    %9 = sbr.rel target = $region3
  $region8: #{conv_block_forward.1} parent=0 // loop_exit
    _

</llo_original>
